<compile_context>
chip_gen: v7x
topology: tpu7x:2x2x1
jax: 0.10.0
libtpu: 0.0.40
codegen_flags: <defaults>
</compile_context>

<pallas_src>
import functools

import jax
import jax.numpy as jnp
from jax import lax
from jax.experimental import pallas as pl
from jax.experimental.pallas import tpu as pltpu


# --------------------------------------------------------------------------
# In-kernel small-matrix inverse (Gauss-Jordan, unpivoted -> SPD inputs).
# Only iota / where / single-axis reductions / broadcasts, so it lowers
# cleanly in Mosaic; the whole working set is a few vregs.
# TODO(synk): unpivoted GJ assumes a well-conditioned SPD A = prec + H^T R^-1 H
#             (true for the module's defaults); a pivoted / Cholesky variant
#             would be needed for adversarially conditioned inputs.
# --------------------------------------------------------------------------
def _gauss_jordan_inverse(a):
    n = a.shape[0]
    dt = a.dtype
    row_ids = lax.broadcasted_iota(jnp.int32, (n, n), 0)
    col_ids = lax.broadcasted_iota(jnp.int32, (n, n), 1)
    lane_ids = lax.broadcasted_iota(jnp.int32, (1, n), 1)
    sub_ids = lax.broadcasted_iota(jnp.int32, (n, 1), 0)
    eye = (row_ids == col_ids).astype(dt)

    def body(k, carry):
        a_mat, m_mat = carry
        is_row_k = row_ids == k
        is_col_k = col_ids == k
        # Row k of both matrices via masked sublane reductions.
        a_row = jnp.sum(jnp.where(is_row_k, a_mat, 0.0), axis=0, keepdims=True)  # (1, n)
        m_row = jnp.sum(jnp.where(is_row_k, m_mat, 0.0), axis=0, keepdims=True)  # (1, n)
        pivot = jnp.sum(jnp.where(lane_ids == k, a_row, 0.0), axis=1, keepdims=True)  # (1, 1)
        inv_pivot = 1.0 / pivot
        a_row = a_row * inv_pivot
        m_row = m_row * inv_pivot
        # Column k = elimination multipliers; zeroed on row k so row k survives.
        colk = jnp.sum(jnp.where(is_col_k, a_mat, 0.0), axis=1, keepdims=True)  # (n, 1)
        colk = jnp.where(sub_ids == k, 0.0, colk)
        a_mat = a_mat - colk * a_row
        m_mat = m_mat - colk * m_row
        a_mat = jnp.where(is_row_k, jnp.broadcast_to(a_row, a_mat.shape), a_mat)
        m_mat = jnp.where(is_row_k, jnp.broadcast_to(m_row, m_mat.shape), m_mat)
        return a_mat, m_mat

    _, inv = lax.fori_loop(0, n, body, (a, eye))
    return inv


# --------------------------------------------------------------------------
# One-shot init kernel (grid=(1,)): posterior covariance P, fused operator M,
# fused offset d.  Batch-independent, so it runs exactly once.
#   P = inv(prec + H^T R^-1 H)                    (in-kernel GJ + NS polish)
#   M = (R^-1 H) @ P^T      (O, S)        [lane-major: M^T = P @ (H^T R^-1)]
#   d = (prec @ prior_mean) @ P^T - bias @ M      (1, S)   [lane-major: (S, 1)]
# --------------------------------------------------------------------------
def _lgs_init_kernel(*refs, identity_noise, noise_scale, lane_major):
    if identity_noise:
        (h_ref, prec_ref, pmean_ref, bias_ref,
         pcov_ref, m_ref, d_ref) = refs
    else:
        (h_ref, rinv_ref, prec_ref, pmean_ref, bias_ref,
         pcov_ref, m_ref, d_ref) = refs

    f32 = jnp.float32
    h = h_ref[...]        # (O, S)
    prec = prec_ref[...]  # (S, S)

    if identity_noise:
        # R = sigma^2 I  =>  R^-1 H = scale * H.  Scale AFTER the matmul
        # (better f32 conditioning), never materialize scale*H.
        innovation = noise_scale * lax.dot_general(
            h, h, (((0,), (0,)), ((), ())), preferred_element_type=f32)      # (S, S)
        wT = None
    else:
        rinv = rinv_ref[...]                                                 # (O, O)
        # wT = H^T R^-1  (S, O): mirrors the torch left-to-right product.
        wT = lax.dot_general(h, rinv, (((0,), (0,)), ((), ())),
                             preferred_element_type=f32)
        innovation = jnp.dot(wT, h, preferred_element_type=f32)              # (S, S)

    a = prec + innovation
    p = _gauss_jordan_inverse(a)
    # One Newton-Schulz polish step  p <- p (2I - a p)  (two tiny MXU matmuls)
    # to pull the inverse down to ~eps*cond accuracy.
    s = a.shape[0]
    eye = (lax.broadcasted_iota(jnp.int32, (s, s), 0)
           == lax.broadcasted_iota(jnp.int32, (s, s), 1)).astype(f32)
    ap = jnp.dot(a, p, preferred_element_type=f32)
    p = jnp.dot(p, 2.0 * eye - ap, preferred_element_type=f32)
    pcov_ref[...] = p

    # c = prior_precision @ prior_mean as a (1, S) row: c[0,s] = sum_j prec[s,j] pm[j]
    c = lax.dot_general(pmean_ref[...], prec, (((1,), (1,)), ((), ())),
                        preferred_element_type=f32)                          # (1, S)
    bias = bias_ref[...]                                                     # (1, O)

    if lane_major:
        # Store M^T (S, O) and d^T (S, 1):   pm^T = M^T @ obs^T + d^T
        if identity_noise:
            m_t = noise_scale * lax.dot_general(
                p, h, (((1,), (1,)), ((), ())), preferred_element_type=f32)  # (S, O)
        else:
            m_t = jnp.dot(p, wT, preferred_element_type=f32)                 # (S, O)
        d_t = (lax.dot_general(p, c, (((1,), (1,)), ((), ())),
                               preferred_element_type=f32)                   # (S, 1)
               - lax.dot_general(m_t, bias, (((1,), (1,)), ((), ())),
                                 preferred_element_type=f32))                # (S, 1)
        m_ref[...] = m_t
        d_ref[...] = d_t
    else:
        # Store M (O, S) and d (1, S):       pm = obs @ M + d
        if identity_noise:
            m = noise_scale * lax.dot_general(
                h, p, (((1,), (1,)), ((), ())), preferred_element_type=f32)  # (O, S)
        else:
            m = lax.dot_general(wT, p, (((0,), (1,)), ((), ())),
                                preferred_element_type=f32)                  # (O, S)
        d = (lax.dot_general(c, p, (((1,), (1,)), ((), ())),
                             preferred_element_type=f32)                     # (1, S)
             - jnp.dot(bias, m, preferred_element_type=f32))                 # (1, S)
        m_ref[...] = m
        d_ref[...] = d


# --------------------------------------------------------------------------
# Batched apply kernels: a single matmul per batch tile.
# --------------------------------------------------------------------------
def _lgs_apply_rows_kernel(m_ref, d_ref, obs_ref, pm_ref):
    # obs (TB, O) @ M (O, S) + d (1, S)  ->  (TB, S)
    pm_ref[...] = (jnp.dot(obs_ref[...], m_ref[...],
                           preferred_element_type=jnp.float32)
                   + d_ref[...])


def _lgs_apply_lanes_kernel(m_t_ref, d_t_ref, obs_t_ref, pm_t_ref):
    # M^T (S, O) @ obs^T (O, TB) + d^T (S, 1)  ->  (S, TB)   (lane-dense output)
    pm_t_ref[...] = (jnp.dot(m_t_ref[...], obs_t_ref[...],
                             preferred_element_type=jnp.float32)
                     + d_t_ref[...])


# --------------------------------------------------------------------------
# Wrapper
# --------------------------------------------------------------------------
def linear_gaussian_forward(
    observation,             # (B, O) f32
    observation_matrix,      # (O, S) f32
    observation_bias,        # (O,)   f32
    prior_precision,         # (S, S) f32
    prior_mean,              # (S,)   f32
    observation_noise=None,       # (O, O) f32 or None
    prior_mean_override=None,
    prior_covariance=None,
    batch_tile=4096,
    lane_major_batch=None,        # None -> auto (B >= 1024)
):
    f32 = jnp.float32
    observation = jnp.asarray(observation, f32)
    B, O = observation.shape
    S = observation_matrix.shape[1]

    if prior_mean_override is not None:
        prior_mean = prior_mean_override
    if prior_covariance is not None:
        # TODO(synk): general prior-covariance inverse stays in XLA (rare path).
        prior_precision = jnp.linalg.inv(prior_covariance)

    identity_noise = observation_noise is None
    if identity_noise:
        # Matches the torch default R = 1e-6 * I exactly (R^-1 = 1e6 * I):
        # no LU inverse and no (O,O)x(O,S) matmul on the default path.
        noise_scale = 1.0e6
        rinv = None
    else:
        noise_scale = 1.0
        # TODO(synk): general observation-noise inverse stays in XLA.
        rinv = jnp.linalg.inv(jnp.asarray(observation_noise, f32)).astype(f32)

    if lane_major_batch is None:
        lane_major_batch = B >= 1024

    h = jnp.asarray(observation_matrix, f32)
    prec = jnp.asarray(prior_precision, f32)
    pmean = jnp.asarray(prior_mean, f32).reshape(1, S)
    bias = jnp.asarray(observation_bias, f32).reshape(1, O)

    const2 = lambda i: (0, 0)

    # ---------------- one-shot init kernel: P, M, d -------------------------
    init_in_specs = [pl.BlockSpec((O, S), const2)]
    init_args = [h]
    if not identity_noise:
        init_in_specs.append(pl.BlockSpec((O, O), const2))
        init_args.append(rinv)
    init_in_specs += [pl.BlockSpec((S, S), const2),
                      pl.BlockSpec((1, S), const2),
                      pl.BlockSpec((1, O), const2)]
    init_args += [prec, pmean, bias]

    m_shape = (S, O) if lane_major_batch else (O, S)
    d_shape = (S, 1) if lane_major_batch else (1, S)

    init_kernel = functools.partial(_lgs_init_kernel,
                                    identity_noise=identity_noise,
                                    noise_scale=noise_scale,
                                    lane_major=lane_major_batch)
    pcov, m_op, d_op = pl.pallas_call(
        init_kernel,
        out_shape=(jax.ShapeDtypeStruct((S, S), f32),
                   jax.ShapeDtypeStruct(m_shape, f32),
                   jax.ShapeDtypeStruct(d_shape, f32)),
        grid_spec=pltpu.PrefetchScalarGridSpec(
            num_scalar_prefetch=0,
            grid=(1,),
            in_specs=init_in_specs,
            out_specs=(pl.BlockSpec((S, S), const2),
                       pl.BlockSpec(m_shape, const2),
                       pl.BlockSpec(d_shape, const2))),
        compiler_params=pltpu.CompilerParams(
            dimension_semantics=("arbitrary",)),
    )(*init_args)

    # ---------------- batched apply kernel ----------------------------------
    # Batch axis is pure data-parallel now (no init-once state inside), so it
    # is marked "parallel" -> both TensorCores can shard it on v7x.
    if lane_major_batch:
        # Batch on lanes: full-width MXU pushes + unmasked lane-dense stores.
        tb = B if B <= batch_tile else max(128, (batch_tile // 128) * 128)
        grid = (pl.cdiv(B, tb),)
        obs_t = observation.T                          # (O, B): one XLA transpose
        pm_t = pl.pallas_call(
            _lgs_apply_lanes_kernel,
            out_shape=jax.ShapeDtypeStruct((S, B), f32),
            grid_spec=pltpu.PrefetchScalarGridSpec(
                num_scalar_prefetch=0,
                grid=grid,
                in_specs=[pl.BlockSpec((S, O), const2),
                          pl.BlockSpec((S, 1), const2),
                          pl.BlockSpec((O, tb), lambda i: (0, i))],
                out_specs=pl.BlockSpec((S, tb), lambda i: (0, i))),
            compiler_params=pltpu.CompilerParams(
                dimension_semantics=("parallel",)),
        )(m_op, d_op, obs_t)
        pm = pm_t.T                                    # (B, S)
    else:
        tb = B if B <= batch_tile else max(8, (batch_tile // 8) * 8)
        grid = (pl.cdiv(B, tb),)
        pm = pl.pallas_call(
            _lgs_apply_rows_kernel,
            out_shape=jax.ShapeDtypeStruct((B, S), f32),
            grid_spec=pltpu.PrefetchScalarGridSpec(
                num_scalar_prefetch=0,
                grid=grid,
                in_specs=[pl.BlockSpec((O, S), const2),
                          pl.BlockSpec((1, S), const2),
                          pl.BlockSpec((tb, O), lambda i: (i, 0))],
                out_specs=pl.BlockSpec((tb, S), lambda i: (i, 0))),
            compiler_params=pltpu.CompilerParams(
                dimension_semantics=("parallel",)),
        )(m_op, d_op, observation)

    # Match torch output shapes: posterior_mean (B, S, 1), posterior_cov (S, S).
    return pm[:, :, None], pcov


# --------------------------------------------------------------------------
# Pure-JAX reference mirroring the PyTorch module exactly.
# --------------------------------------------------------------------------
def _reference_forward(observation, H, bias, prior_precision, prior_mean,
                       observation_noise=None):
    O = H.shape[0]
    if observation_noise is None:
        observation_noise = 1e-6 * jnp.eye(O, dtype=jnp.float32)
    rinv = jnp.linalg.inv(observation_noise)
    innovation = H.T @ rinv @ H
    posterior_cov = jnp.linalg.inv(prior_precision + innovation)
    residual = jnp.einsum("so,bo->bs", H.T @ rinv, observation - bias)
    v = (prior_precision @ prior_mean)[None, :] + residual
    posterior_mean = jnp.einsum("sj,bj->bs", posterior_cov, v)[:, :, None]
    return posterior_mean, posterior_cov


def _rel_max_err(x, y):
    return float(jnp.max(jnp.abs(x - y)) / jnp.maximum(jnp.max(jnp.abs(y)), 1e-30))


if __name__ == "__main__":
    # Small deterministic setup consistent with the module:
    #   state_dim S = 32, observation_dim O = 16, batch B = 8.
    S, O, B = 32, 16, 8
    key = jax.random.PRNGKey(0)
    k_h, k_b, k_obs, k_n = jax.random.split(key, 4)

    observation_matrix = 0.001 * jax.random.normal(k_h, (O, S), dtype=jnp.float32)
    observation_bias = 1e-6 * jax.random.normal(k_b, (O,), dtype=jnp.float32)
    prior_mean = jnp.zeros((S,), dtype=jnp.float32)
    prior_precision = jnp.eye(S, dtype=jnp.float32)
    observation = jax.random.normal(k_obs, (B, O), dtype=jnp.float32)

    ref_mean, ref_cov = _reference_forward(
        observation, observation_matrix, observation_bias,
        prior_precision, prior_mean, observation_noise=None)

    # --- default path: observation_noise is None, row-major batch layout ----
    post_mean, post_cov = linear_gaussian_forward(
        observation, observation_matrix, observation_bias,
        prior_precision, prior_mean, observation_noise=None,
        lane_major_batch=False)
    jax.block_until_ready(post_mean)
    jax.block_until_ready(post_cov)

    assert post_mean.shape == (B, S, 1)
    assert post_cov.shape == (S, S)
    # The 1e6 noise precision amplifies the residual, so posterior-mean
    # agreement is limited to ~1e-4..1e-3 of its overall scale in f32 (the
    # reference LU inverse and the in-kernel GJ+NS inverse differ at eps*cond).
    assert _rel_max_err(post_cov, ref_cov) < 1e-4
    assert _rel_max_err(post_mean, ref_mean) < 1e-3

    # --- lane-major batch layout (batch on lanes), identity noise -----------
    post_mean_l, post_cov_l = linear_gaussian_forward(
        observation, observation_matrix, observation_bias,
        prior_precision, prior_mean, observation_noise=None,
        lane_major_batch=True)
    jax.block_until_ready(post_mean_l)
    jax.block_until_ready(post_cov_l)

    assert post_mean_l.shape == (B, S, 1)
    assert _rel_max_err(post_cov_l, ref_cov) < 1e-4
    assert _rel_max_err(post_mean_l, ref_mean) < 1e-3

    # --- general path: explicit SPD observation noise (exercises rinv branch)
    Wn = jax.random.normal(k_n, (O, O), dtype=jnp.float32)
    obs_noise = 1e-6 * (jnp.eye(O, dtype=jnp.float32) + 0.1 * (Wn @ Wn.T) / O)

    post_mean2, post_cov2 = linear_gaussian_forward(
        observation, observation_matrix, observation_bias,
        prior_precision, prior_mean, observation_noise=obs_noise,
        lane_major_batch=False)
    jax.block_until_ready(post_mean2)
    jax.block_until_ready(post_cov2)

    ref_mean2, ref_cov2 = _reference_forward(
        observation, observation_matrix, observation_bias,
        prior_precision, prior_mean, observation_noise=obs_noise)

    assert _rel_max_err(post_cov2, ref_cov2) < 1e-4
    assert _rel_max_err(post_mean2, ref_mean2) < 1e-3

    print("KERNEL_OK")
</pallas_src>

<mosaic_0001>
module attributes {stable_mosaic.version = 11 : i64} {
  func.func @_lgs_init_kernel(%arg0: i32, %arg1: memref<16x32xf32, #tpu.memory_space<vmem>>, %arg2: memref<32x32xf32, #tpu.memory_space<vmem>>, %arg3: memref<1x32xf32, #tpu.memory_space<vmem>>, %arg4: memref<1x16xf32, #tpu.memory_space<vmem>>, %arg5: memref<32x32xf32, #tpu.memory_space<vmem>>, %arg6: memref<16x32xf32, #tpu.memory_space<vmem>>, %arg7: memref<1x32xf32, #tpu.memory_space<vmem>>) attributes {dimension_semantics = [#tpu.dimension_semantics<arbitrary>], iteration_bounds = array<i64: 1>, scalar_prefetch = 0 : i64, scratch_operands = 0 : i64, tpu.core_type = #tpu.core_type<tc>, window_params = [{pipeline_mode = #tpu.pipeline_mode<synchronous>, transform_indices = @transform_0, window_bounds = array<i64: 16, 32>}, {pipeline_mode = #tpu.pipeline_mode<synchronous>, transform_indices = @transform_1, window_bounds = array<i64: 32, 32>}, {pipeline_mode = #tpu.pipeline_mode<synchronous>, transform_indices = @transform_2, window_bounds = array<i64: 1, 32>}, {pipeline_mode = #tpu.pipeline_mode<synchronous>, transform_indices = @transform_3, window_bounds = array<i64: 1, 16>}, {pipeline_mode = #tpu.pipeline_mode<synchronous>, transform_indices = @transform_4, window_bounds = array<i64: 32, 32>}, {pipeline_mode = #tpu.pipeline_mode<synchronous>, transform_indices = @transform_5, window_bounds = array<i64: 16, 32>}, {pipeline_mode = #tpu.pipeline_mode<synchronous>, transform_indices = @transform_6, window_bounds = array<i64: 1, 32>}]} {
    %c0 = arith.constant 0 : index
    %c0_0 = arith.constant 0 : index
    %0 = vector.load %arg1[%c0, %c0_0] : memref<16x32xf32, #tpu.memory_space<vmem>>, vector<16x32xf32>
    %c0_1 = arith.constant 0 : index
    %c0_2 = arith.constant 0 : index
    %1 = vector.load %arg2[%c0_1, %c0_2] : memref<32x32xf32, #tpu.memory_space<vmem>>, vector<32x32xf32>
    %cst = arith.constant dense<0.000000e+00> : vector<32x32xf32>
    %2 = tpu.matmul %0, %0, %cst {dimension_numbers = #tpu.dot_dimension_numbers<[0], [0], [1], [1], [0, 1, 1, 1], [], []>} : vector<16x32xf32>, vector<16x32xf32>, vector<32x32xf32> -> vector<32x32xf32>
    %cst_3 = arith.constant 1.000000e+06 : f32
    %3 = vector.broadcast %cst_3 : f32 to vector<32x32xf32>
    %4 = arith.mulf %3, %2 : vector<32x32xf32>
    %5 = arith.addf %1, %4 : vector<32x32xf32>
    %6 = tpu.iota {dimensions = array<i32: 0>} : vector<32x32xi32>
    %7 = tpu.iota {dimensions = array<i32: 1>} : vector<32x32xi32>
    %8 = tpu.iota {dimensions = array<i32: 1>} : vector<1x32xi32>
    %9 = tpu.iota {dimensions = array<i32: 0>} : vector<32x1xi32>
    %10 = arith.cmpi eq, %6, %7 : vector<32x32xi32>
    %11 = arith.extui %10 : vector<32x32xi1> to vector<32x32xi32>
    %12 = arith.sitofp %11 : vector<32x32xi32> to vector<32x32xf32>
    %c0_i32 = arith.constant 0 : i32
    %c32_i32 = arith.constant 32 : i32
    %13 = arith.addi %c0_i32, %c32_i32 : i32
    %c1_i32 = arith.constant 1 : i32
    %14:2 = scf.for %arg8 = %c0_i32 to %13 step %c1_i32 iter_args(%arg9 = %5, %arg10 = %12) -> (vector<32x32xf32>, vector<32x32xf32>)  : i32 {
      %37 = vector.broadcast %arg8 : i32 to vector<32x32xi32>
      %38 = arith.cmpi eq, %6, %37 : vector<32x32xi32>
      %39 = vector.broadcast %arg8 : i32 to vector<32x32xi32>
      %40 = arith.cmpi eq, %7, %39 : vector<32x32xi32>
      %cst_23 = arith.constant 0.000000e+00 : f32
      %41 = vector.broadcast %cst_23 : f32 to vector<32x32xf32>
      %42 = arith.select %38, %arg9, %41 : vector<32x32xi1>, vector<32x32xf32>
      %cst_24 = arith.constant dense<0.000000e+00> : vector<32xf32>
      %43 = vector.multi_reduction <add>, %42, %cst_24 [0] : vector<32x32xf32> to vector<32xf32>
      %44 = vector.shape_cast %43 : vector<32xf32> to vector<1x32xf32>
      %cst_25 = arith.constant 0.000000e+00 : f32
      %45 = vector.broadcast %cst_25 : f32 to vector<32x32xf32>
      %46 = arith.select %38, %arg10, %45 : vector<32x32xi1>, vector<32x32xf32>
      %cst_26 = arith.constant dense<0.000000e+00> : vector<32xf32>
      %47 = vector.multi_reduction <add>, %46, %cst_26 [0] : vector<32x32xf32> to vector<32xf32>
      %48 = vector.shape_cast %47 : vector<32xf32> to vector<1x32xf32>
      %49 = vector.broadcast %arg8 : i32 to vector<1x32xi32>
      %50 = arith.cmpi eq, %8, %49 : vector<1x32xi32>
      %cst_27 = arith.constant 0.000000e+00 : f32
      %51 = vector.broadcast %cst_27 : f32 to vector<1x32xf32>
      %52 = arith.select %50, %44, %51 : vector<1x32xi1>, vector<1x32xf32>
      %cst_28 = arith.constant dense<0.000000e+00> : vector<1xf32>
      %53 = vector.multi_reduction <add>, %52, %cst_28 [1] : vector<1x32xf32> to vector<1xf32>
      %54 = vector.shape_cast %53 : vector<1xf32> to vector<1x1xf32>
      %cst_29 = arith.constant 1.000000e+00 : f32
      %55 = vector.broadcast %cst_29 : f32 to vector<1x1xf32>
      %56 = arith.divf %55, %54 : vector<1x1xf32>
      %57 = vector.broadcast %56 : vector<1x1xf32> to vector<1x32xf32>
      %58 = arith.mulf %44, %57 : vector<1x32xf32>
      %59 = vector.broadcast %56 : vector<1x1xf32> to vector<1x32xf32>
      %60 = arith.mulf %48, %59 : vector<1x32xf32>
      %cst_30 = arith.constant 0.000000e+00 : f32
      %61 = vector.broadcast %cst_30 : f32 to vector<32x32xf32>
      %62 = arith.select %40, %arg9, %61 : vector<32x32xi1>, vector<32x32xf32>
      %cst_31 = arith.constant dense<0.000000e+00> : vector<32xf32>
      %63 = vector.multi_reduction <add>, %62, %cst_31 [1] : vector<32x32xf32> to vector<32xf32>
      %64 = vector.shape_cast %63 : vector<32xf32> to vector<32x1xf32>
      %65 = vector.broadcast %arg8 : i32 to vector<32x1xi32>
      %66 = arith.cmpi eq, %9, %65 : vector<32x1xi32>
      %cst_32 = arith.constant 0.000000e+00 : f32
      %67 = vector.broadcast %cst_32 : f32 to vector<32x1xf32>
      %68 = arith.select %66, %67, %64 : vector<32x1xi1>, vector<32x1xf32>
      %69 = vector.broadcast %68 : vector<32x1xf32> to vector<32x32xf32>
      %70 = vector.broadcast %58 : vector<1x32xf32> to vector<32x32xf32>
      %71 = arith.mulf %69, %70 : vector<32x32xf32>
      %72 = arith.subf %arg9, %71 : vector<32x32xf32>
      %73 = vector.broadcast %68 : vector<32x1xf32> to vector<32x32xf32>
      %74 = vector.broadcast %60 : vector<1x32xf32> to vector<32x32xf32>
      %75 = arith.mulf %73, %74 : vector<32x32xf32>
      %76 = arith.subf %arg10, %75 : vector<32x32xf32>
      %77 = vector.shape_cast %58 : vector<1x32xf32> to vector<1x32xf32>
      %78 = vector.broadcast %77 : vector<1x32xf32> to vector<32x32xf32>
      %79 = arith.select %38, %78, %72 : vector<32x32xi1>, vector<32x32xf32>
      %80 = vector.shape_cast %60 : vector<1x32xf32> to vector<1x32xf32>
      %81 = vector.broadcast %80 : vector<1x32xf32> to vector<32x32xf32>
      %82 = arith.select %38, %81, %76 : vector<32x32xi1>, vector<32x32xf32>
      scf.yield %79, %82 : vector<32x32xf32>, vector<32x32xf32>
    }
    %c32_i32_4 = arith.constant 32 : i32
    %15 = tpu.iota {dimensions = array<i32: 0>} : vector<32x32xi32>
    %16 = tpu.iota {dimensions = array<i32: 1>} : vector<32x32xi32>
    %17 = arith.cmpi eq, %15, %16 : vector<32x32xi32>
    %18 = arith.extui %17 : vector<32x32xi1> to vector<32x32xi32>
    %19 = arith.sitofp %18 : vector<32x32xi32> to vector<32x32xf32>
    %cst_5 = arith.constant dense<0.000000e+00> : vector<32x32xf32>
    %20 = tpu.matmul %5, %14#1, %cst_5 {dimension_numbers = #tpu.dot_dimension_numbers<[1], [0], [0], [1], [0, 0, 1, 1], [], []>} : vector<32x32xf32>, vector<32x32xf32>, vector<32x32xf32> -> vector<32x32xf32>
    %cst_6 = arith.constant 2.000000e+00 : f32
    %21 = vector.broadcast %cst_6 : f32 to vector<32x32xf32>
    %22 = arith.mulf %21, %19 : vector<32x32xf32>
    %23 = arith.subf %22, %20 : vector<32x32xf32>
    %cst_7 = arith.constant dense<0.000000e+00> : vector<32x32xf32>
    %24 = tpu.matmul %14#1, %23, %cst_7 {dimension_numbers = #tpu.dot_dimension_numbers<[1], [0], [0], [1], [0, 0, 1, 1], [], []>} : vector<32x32xf32>, vector<32x32xf32>, vector<32x32xf32> -> vector<32x32xf32>
    %c0_8 = arith.constant 0 : index
    %c0_9 = arith.constant 0 : index
    %25 = vector.load %arg5[%c0_8, %c0_9] : memref<32x32xf32, #tpu.memory_space<vmem>>, vector<32x32xf32>
    tpu.vector_store %arg5[%c0_8, %c0_9], %24 {strides = array<i32>} : memref<32x32xf32, #tpu.memory_space<vmem>>, vector<32x32xf32>,
    %c0_10 = arith.constant 0 : index
    %c0_11 = arith.constant 0 : index
    %26 = vector.load %arg3[%c0_10, %c0_11] : memref<1x32xf32, #tpu.memory_space<vmem>>, vector<1x32xf32>
    %cst_12 = arith.constant dense<0.000000e+00> : vector<1x32xf32>
    %27 = tpu.matmul %26, %1, %cst_12 {dimension_numbers = #tpu.dot_dimension_numbers<[1], [1], [0], [0], [0, 0, 1, 0], [], []>} : vector<1x32xf32>, vector<32x32xf32>, vector<1x32xf32> -> vector<1x32xf32>
    %c0_13 = arith.constant 0 : index
    %c0_14 = arith.constant 0 : index
    %28 = vector.load %arg4[%c0_13, %c0_14] : memref<1x16xf32, #tpu.memory_space<vmem>>, vector<1x16xf32>
    %cst_15 = arith.constant dense<0.000000e+00> : vector<16x32xf32>
    %29 = tpu.matmul %0, %24, %cst_15 {dimension_numbers = #tpu.dot_dimension_numbers<[1], [1], [0], [0], [0, 0, 1, 0], [], []>} : vector<16x32xf32>, vector<32x32xf32>, vector<16x32xf32> -> vector<16x32xf32>
    %cst_16 = arith.constant 1.000000e+06 : f32
    %30 = vector.broadcast %cst_16 : f32 to vector<16x32xf32>
    %31 = arith.mulf %30, %29 : vector<16x32xf32>
    %cst_17 = arith.constant dense<0.000000e+00> : vector<1x32xf32>
    %32 = tpu.matmul %27, %24, %cst_17 {dimension_numbers = #tpu.dot_dimension_numbers<[1], [1], [0], [0], [0, 0, 1, 0], [], []>} : vector<1x32xf32>, vector<32x32xf32>, vector<1x32xf32> -> vector<1x32xf32>
    %cst_18 = arith.constant dense<0.000000e+00> : vector<1x32xf32>
    %33 = tpu.matmul %28, %31, %cst_18 {dimension_numbers = #tpu.dot_dimension_numbers<[1], [0], [0], [1], [0, 0, 1, 1], [], []>} : vector<1x16xf32>, vector<16x32xf32>, vector<1x32xf32> -> vector<1x32xf32>
    %34 = arith.subf %32, %33 : vector<1x32xf32>
    %c0_19 = arith.constant 0 : index
    %c0_20 = arith.constant 0 : index
    %35 = vector.load %arg6[%c0_19, %c0_20] : memref<16x32xf32, #tpu.memory_space<vmem>>, vector<16x32xf32>
    tpu.vector_store %arg6[%c0_19, %c0_20], %31 {strides = array<i32>} : memref<16x32xf32, #tpu.memory_space<vmem>>, vector<16x32xf32>,
    %c0_21 = arith.constant 0 : index
    %c0_22 = arith.constant 0 : index
    %36 = vector.load %arg7[%c0_21, %c0_22] : memref<1x32xf32, #tpu.memory_space<vmem>>, vector<1x32xf32>
    tpu.vector_store %arg7[%c0_21, %c0_22], %34 {strides = array<i32>} : memref<1x32xf32, #tpu.memory_space<vmem>>, vector<1x32xf32>,
    return
  }
  func.func @transform_0(%arg0: i32) -> (i32, i32) {
    %c0_i32 = arith.constant 0 : i32
    %c0_i32_0 = arith.constant 0 : i32
    %c0_i32_1 = arith.constant 0 : i32
    return %c0_i32, %c0_i32_0 : i32, i32
  }
  func.func @transform_1(%arg0: i32) -> (i32, i32) {
    %c0_i32 = arith.constant 0 : i32
    %c0_i32_0 = arith.constant 0 : i32
    %c0_i32_1 = arith.constant 0 : i32
    return %c0_i32, %c0_i32_0 : i32, i32
  }
  func.func @transform_2(%arg0: i32) -> (i32, i32) {
    %c0_i32 = arith.constant 0 : i32
    %c0_i32_0 = arith.constant 0 : i32
    %c0_i32_1 = arith.constant 0 : i32
    return %c0_i32, %c0_i32_0 : i32, i32
  }
  func.func @transform_3(%arg0: i32) -> (i32, i32) {
    %c0_i32 = arith.constant 0 : i32
    %c0_i32_0 = arith.constant 0 : i32
    %c0_i32_1 = arith.constant 0 : i32
    return %c0_i32, %c0_i32_0 : i32, i32
  }
  func.func @transform_4(%arg0: i32) -> (i32, i32) {
    %c0_i32 = arith.constant 0 : i32
    %c0_i32_0 = arith.constant 0 : i32
    %c0_i32_1 = arith.constant 0 : i32
    return %c0_i32, %c0_i32_0 : i32, i32
  }
  func.func @transform_5(%arg0: i32) -> (i32, i32) {
    %c0_i32 = arith.constant 0 : i32
    %c0_i32_0 = arith.constant 0 : i32
    %c0_i32_1 = arith.constant 0 : i32
    return %c0_i32, %c0_i32_0 : i32, i32
  }
  func.func @transform_6(%arg0: i32) -> (i32, i32) {
    %c0_i32 = arith.constant 0 : i32
    %c0_i32_0 = arith.constant 0 : i32
    %c0_i32_1 = arith.constant 0 : i32
    return %c0_i32, %c0_i32_0 : i32, i32
  }
}

</mosaic_0001>

<llo_original>
// kernel: tpu_custom_call.1
$region0: #{tpu_custom_call.1}
  #allocation0 [shape = 'u32[]', space=smem, size = 0x4, offset = 0x4, fixed_abs, tag = 'smem constant byte address 0x4 - core index']
  #allocation1 [shape = 'u32[144,128]{1,0:T(1,128)}', space=vmem, size = 0x12000, scoped, tag = 'internal scratch']
  %s0 = inlined_call_operand.hbm [shape: f32[16,32], index: 0, kind: input, shape index: {}]
  %s1 = inlined_call_operand.hbm [shape: f32[32,32], index: 1, kind: input, shape index: {}]
  %s2 = inlined_call_operand.vmem [shape: f32[1,32], index: 2, kind: input, shape index: {}]
  %s3 = inlined_call_operand.vmem [shape: f32[1,16], index: 3, kind: input, shape index: {}]
  %s4 = inlined_call_operand.hbm [shape: f32[32,32], index: 4, kind: output, shape index: {0}]
  %s5 = inlined_call_operand.hbm [shape: f32[16,32], index: 5, kind: output, shape index: {1}]
  %s6 = inlined_call_operand.hbm [shape: f32[1,32], index: 6, kind: output, shape index: {2}]
  %7 = xla_tuple %s4, %s5, %s6
  %s8 = sld [smem:[#allocation0]]
  $region57: #{tpu_custom_call.1} parent=0
    _
  %s10 = ssub.s32 1, %s8
  %s11 = scalar_select 0, %s10, %s8
  $region1: #{tpu_custom_call.1} parent=0
    #allocation2 [shape = 'u8[8192]{0}', space=vmem, size = 0x2000, scoped, tag = 'input window, operand 0, single buffered']
    #allocation3 [shape = 's32[1]{0}', space=sflag, size = 0x4, scoped, tag = 'scoped memory for tpu_custom_call.1']
    #allocation4 [shape = 's32[1]{0}', space=sflag, size = 0x4, scoped, tag = 'scoped memory for tpu_custom_call.1']
    #allocation5 [shape = 'u8[16384]{0}', space=vmem, size = 0x4000, scoped, tag = 'input window, operand 1, single buffered']
    #allocation6 [shape = 's32[1]{0}', space=sflag, size = 0x4, scoped, tag = 'scoped memory for tpu_custom_call.1']
    #allocation7 [shape = 'u8[16384]{0}', space=vmem, size = 0x4000, scoped, tag = 'output window, operand 0, single buffered']
    #allocation8 [shape = 'u8[8192]{0}', space=vmem, size = 0x2000, scoped, tag = 'output window, operand 1, single buffered']
    #allocation9 [shape = 's32[1]{0}', space=sflag, size = 0x4, scoped, tag = 'scoped memory for tpu_custom_call.1']
    #allocation10 [shape = 'u8[512]{0}', space=vmem, size = 0x400, scoped, tag = 'output window, operand 2, single buffered']
    %12 = vsyncpa [#allocation3], 0
    %13 = vsyncpa [#allocation6], 0
    %14 = vsyncpa [#allocation4], 0
    %15 = vsyncpa [#allocation9], 0
    // Predicated region
    $region2: #{tpu_custom_call.1} parent=1 // pred_check
      _
    $region3: #{tpu_custom_call.1} parent=1 // pred_check_branch
      %17 = sbr.rel (0) target = $region5
    $region4: #{tpu_custom_call.1} parent=1 // pred_region
      %s19 = ssub.s32 256, 256
      %20 = vsyncadd [#allocation3], %s19
      %s21 = sshll.u32 [#allocation2], 4
      %s22 = int_to_ptr.vmem [resolvable:$true] %s21
      %27 = dma.hbm_to_vmem [thread:$0]  %s0, 256, %s22, [#allocation3], 128, 128, 8
    $region5: #{tpu_custom_call.1} parent=1 // pred_fallthru
      _
    // Predicated region
    $region6: #{tpu_custom_call.1} parent=1 // pred_check
      _
    $region7: #{tpu_custom_call.1} parent=1 // pred_check_branch
      %29 = sbr.rel (0) target = $region9
    $region8: #{tpu_custom_call.1} parent=1 // pred_region
      %s31 = ssub.s32 512, 512
      %32 = vsyncadd [#allocation6], %s31
      %s33 = sshll.u32 [#allocation5], 4
      %s34 = int_to_ptr.vmem [resolvable:$true] %s33
      %39 = dma.hbm_to_vmem [thread:$0]  %s1, 512, %s34, [#allocation6], 128, 128, 8
    $region9: #{tpu_custom_call.1} parent=1 // pred_fallthru
      _
    // Predicated region
    $region10: #{tpu_custom_call.1} parent=1 // pred_check
      _
    $region11: #{tpu_custom_call.1} parent=1 // pred_check_branch
      %41 = sbr.rel (0) target = $region13
    $region12: #{tpu_custom_call.1} parent=1 // pred_region
      _
    $region13: #{tpu_custom_call.1} parent=1 // pred_fallthru
      _
    // Predicated region
    $region14: #{tpu_custom_call.1} parent=1 // pred_check
      _
    $region15: #{tpu_custom_call.1} parent=1 // pred_check_branch
      %43 = sbr.rel (0) target = $region17
    $region16: #{tpu_custom_call.1} parent=1 // pred_region
      _
    $region17: #{tpu_custom_call.1} parent=1 // pred_fallthru
      _
    // Predicated region
    $region18: #{tpu_custom_call.1} parent=1 // pred_check
      _
    $region19: #{tpu_custom_call.1} parent=1 // pred_check_branch
      %45 = sbr.rel (0) target = $region21
    $region20: #{tpu_custom_call.1} parent=1 // pred_region
      %46 = dma.done [#allocation3], 256
    $region21: #{tpu_custom_call.1} parent=1 // pred_fallthru
      _
    // Predicated region
    $region22: #{tpu_custom_call.1} parent=1 // pred_check
      _
    $region23: #{tpu_custom_call.1} parent=1 // pred_check_branch
      %48 = sbr.rel (0) target = $region25
    $region24: #{tpu_custom_call.1} parent=1 // pred_region
      %49 = dma.done [#allocation6], 512
    $region25: #{tpu_custom_call.1} parent=1 // pred_fallthru
      _
    %v50 = vld [vmem:[#allocation2] sm:$0xff]
    %v51 = vld [vmem:[#allocation2 + $0x8] sm:$0xff]
    %v52 = vld [vmem:[#allocation5] sm:$0xff]
    %v53 = vld [vmem:[#allocation5 + $0x8] sm:$0xff]
    %v54 = vld [vmem:[#allocation5 + $0x10] sm:$0xff]
    %v55 = vld [vmem:[#allocation5 + $0x18] sm:$0xff]
    %56 = vxpose.xlu0.b32.start [1/16] %v50, 128
    %57 = vxpose.xlu0.b32.cont [2/16] %v51, 128
    %58 = vxpose.xlu0.b32.cont [3/16] 0.0, 128
    %59 = vxpose.xlu0.b32.cont [4/16] 0.0, 128
    %60 = vxpose.xlu0.b32.cont [5/16] 0.0, 128
    %61 = vxpose.xlu0.b32.cont [6/16] 0.0, 128
    %62 = vxpose.xlu0.b32.cont [7/16] 0.0, 128
    %63 = vxpose.xlu0.b32.cont [8/16] 0.0, 128
    %64 = vxpose.xlu0.b32.cont [9/16] 0.0, 128
    %65 = vxpose.xlu0.b32.cont [10/16] 0.0, 128
    %66 = vxpose.xlu0.b32.cont [11/16] 0.0, 128
    %67 = vxpose.xlu0.b32.cont [12/16] 0.0, 128
    %68 = vxpose.xlu0.b32.cont [13/16] 0.0, 128
    %69 = vxpose.xlu0.b32.cont [14/16] 0.0, 128
    %70 = vxpose.xlu0.b32.cont [15/16] 0.0, 128
    %71 = vxpose.xlu0.b32.end [16/16] 0.0, 128
    %v72 = vpop.trf.xlu0
    %v73 = vpop.trf.xlu0
    %v74 = vpop.trf.xlu0
    %v75 = vpop.trf.xlu0
    %v76 = vpop.trf.xlu0
    %v77 = vpop.trf.xlu0
    %v78 = vpop.trf.xlu0
    %v79 = vpop.trf.xlu0
    %v80 = vpop.trf.xlu0
    %v81 = vpop.trf.xlu0
    %v82 = vpop.trf.xlu0
    %v83 = vpop.trf.xlu0
    %v84 = vpop.trf.xlu0
    %v85 = vpop.trf.xlu0
    %v86 = vpop.trf.xlu0
    %v87 = vpop.trf.xlu0
    %vm88 = vcmask 130048
    %v90 = vsel %vm88, %v72, 0
    %v93 = vsel %vm88, %v73, 0
    %v96 = vsel %vm88, %v74, 0
    %v99 = vsel %vm88, %v75, 0
    %101 = vmatprep.subr.mxu0 0.0
    %102 = vmatpush1.msra.mxu0 %v50
    %103 = vmatprep.subr.mxu0 0.0
    %104 = vmatpush1.msra.mxu0 %v51
    %105 = vmatprep.subr.mxu0 0.0
    %106 = vmatpush1.msra.mxu0 0.0
    %107 = vmatprep.subr.mxu0 0.0
    %108 = vmatpush1.msra.mxu0 0.0
    %109 = vmatprep.subr.mxu0 0.0
    %110 = vmatpush1.msra.mxu0 0.0
    %111 = vmatprep.subr.mxu0 0.0
    %112 = vmatpush1.msra.mxu0 0.0
    %113 = vmatprep.subr.mxu0 0.0
    %114 = vmatpush1.msra.mxu0 0.0
    %115 = vmatprep.subr.mxu0 0.0
    %116 = vmatpush1.msra.mxu0 0.0
    %117 = vmatprep.subr.mxu0 0.0
    %118 = vmatpush1.msra.mxu0 0.0
    %119 = vmatprep.subr.mxu0 0.0
    %120 = vmatpush1.msra.mxu0 0.0
    %121 = vmatprep.subr.mxu0 0.0
    %122 = vmatpush1.msra.mxu0 0.0
    %123 = vmatprep.subr.mxu0 0.0
    %124 = vmatpush1.msra.mxu0 0.0
    %125 = vmatprep.subr.mxu0 0.0
    %126 = vmatpush1.msra.mxu0 0.0
    %127 = vmatprep.subr.mxu0 0.0
    %128 = vmatpush1.msra.mxu0 0.0
    %129 = vmatprep.subr.mxu0 0.0
    %130 = vmatpush1.msra.mxu0 0.0
    %131 = vmatprep.subr.mxu0 0.0
    %132 = vmatpush1.msra.mxu0 0.0
    %133 = vmatprep.subr.mxu0 0.0
    %134 = vmatpush1.msra.mxu0 0.0
    %135 = vmatprep.subr.mxu0 0.0
    %136 = vmatpush1.msra.mxu0 0.0
    %137 = vmatprep.subr.mxu0 0.0
    %138 = vmatpush1.msra.mxu0 0.0
    %139 = vmatprep.subr.mxu0 0.0
    %140 = vmatpush1.msra.mxu0 0.0
    %141 = vmatprep.subr.mxu0 0.0
    %142 = vmatpush1.msra.mxu0 0.0
    %143 = vmatprep.subr.mxu0 0.0
    %144 = vmatpush1.msra.mxu0 0.0
    %145 = vmatprep.subr.mxu0 0.0
    %146 = vmatpush1.msra.mxu0 0.0
    %147 = vmatprep.subr.mxu0 0.0
    %148 = vmatpush1.msra.mxu0 0.0
    %149 = vmatprep.subr.mxu0 0.0
    %150 = vmatpush1.msra.mxu0 0.0
    %151 = vmatprep.subr.mxu0 0.0
    %152 = vmatpush1.msra.mxu0 0.0
    %153 = vmatprep.subr.mxu0 0.0
    %154 = vmatpush1.msra.mxu0 0.0
    %155 = vmatprep.subr.mxu0 0.0
    %156 = vmatpush1.msra.mxu0 0.0
    %157 = vmatprep.subr.mxu0 0.0
    %158 = vmatpush1.msra.mxu0 0.0
    %159 = vmatprep.subr.mxu0 0.0
    %160 = vmatpush1.msra.mxu0 0.0
    %161 = vmatprep.subr.mxu0 0.0
    %162 = vmatpush1.msra.mxu0 0.0
    %163 = vmatprep.subr.mxu0 0.0
    %164 = vmatpush1.msra.mxu0 0.0
    %165 = vmatprep.mubr.f32.mxu0 0.0
    %166 = vmatmul.mubr.f32.gmra.mrb[0].mxu0 %v90
    %v167 = vpop.f32.mrb[0].mxu0
    %v168 = vadd.f32 0.0, %v167
    %v169 = vpop.f32.mrb[0].mxu0
    %170 = vmatprep.mubr.f32.mxu0 0.0
    %171 = vmatmul.mubr.f32.gmra.mrb[0].mxu0 %v93
    %v172 = vpop.f32.mrb[0].mxu0
    %v173 = vadd.f32 0.0, %v172
    %v174 = vpop.f32.mrb[0].mxu0
    %175 = vmatprep.mubr.f32.mxu0 0.0
    %176 = vmatmul.mubr.f32.gmra.mrb[0].mxu0 %v96
    %v177 = vpop.f32.mrb[0].mxu0
    %v178 = vadd.f32 0.0, %v177
    %v179 = vpop.f32.mrb[0].mxu0
    %180 = vmatprep.mubr.f32.mxu0 0.0
    %181 = vmatmul.mubr.f32.gmra.mrb[0].mxu0 %v99
    %v182 = vpop.f32.mrb[0].mxu0
    %v183 = vadd.f32 0.0, %v182
    %v184 = vpop.f32.mrb[0].mxu0
    %185 = vdwg.mxu0
    %v186 = vmul.f32 %v168, 1000000.0
    %v187 = vmul.f32 %v173, 1000000.0
    %v188 = vmul.f32 %v178, 1000000.0
    %v189 = vmul.f32 %v183, 1000000.0
    %v190 = vadd.f32 %v52, %v186
    %v191 = vadd.f32 %v53, %v187
    %v192 = vadd.f32 %v54, %v188
    %v193 = vadd.f32 %v55, %v189
    %v194 = vlaneseq
    %v195 = vshrl.u32 %v194, 7
    %v196 = vadd.s32 %v195, 8
    %v197 = vadd.s32 %v195, 16
    %v198 = vadd.s32 %v195, 24
    %v199 = vlaneseq
    %v200 = vand.u32 %v199, 127
    %vm201 = vcmp.eq.s32.totalorder %v195, %v200
    %vm202 = vcmp.eq.s32.totalorder %v196, %v200
    %vm203 = vcmp.eq.s32.totalorder %v197, %v200
    %vm204 = vcmp.eq.s32.totalorder %v198, %v200
    %v205 = vsel %vm201, 1, 0
    %v206 = vsel %vm202, 1, 0
    %v207 = vsel %vm203, 1, 0
    %v208 = vsel %vm204, 1, 0
    %v209 = vcvt.s32.f32 %v205
    %v210 = vcvt.s32.f32 %v206
    %v211 = vcvt.s32.f32 %v207
    %v212 = vcvt.s32.f32 %v208
    loop: start=0, step=1, limit=32
    $region26: #{tpu_custom_call.1} parent=1 // loop_pre_header
      _
    $region27: #{tpu_custom_call.1} parent=1 // loop_header
      %s214 = sphi 0, %s218
      %p215 = scmp.ge.s32.totalorder %s214, 32
      %v219 = vphi %v190, %v312
      %v220 = vphi %v191, %v313
      %v221 = vphi %v192, %v314
      %v222 = vphi %v193, %v315
      %v223 = vphi %v209, %v316
      %v224 = vphi %v210, %v317
      %v225 = vphi %v211, %v318
      %v226 = vphi %v212, %v319
    $region28: #{tpu_custom_call.1} parent=1 // loop_header_branch
      %217 = sbr.rel (%p215) target = $region32
    $region29: #{tpu_custom_call.1} parent=1 // loop_body
      %v227 = vstv %s214
      %vm228 = vcmp.eq.s32.totalorder %v195, %v227
      %vm229 = vcmp.eq.s32.totalorder %v196, %v227
      %vm230 = vcmp.eq.s32.totalorder %v197, %v227
      %vm231 = vcmp.eq.s32.totalorder %v198, %v227
      %vm232 = vcmp.eq.s32.totalorder %v200, %v227
      %v233 = vsel %vm228, %v219, 0.0
      %v234 = vsel %vm229, %v220, 0.0
      %v235 = vsel %vm230, %v221, 0.0
      %v236 = vsel %vm231, %v222, 0.0
      %vm237 = vcmask 261120
      %v238 = vsel %vm237, %v233, 0.0
      %v239 = vsel %vm237, %v234, 0.0
      %v240 = vadd.f32 %v238, %v239
      %v241 = vsel %vm237, %v235, 0.0
      %v242 = vadd.f32 %v240, %v241
      %v243 = vsel %vm237, %v236, 0.0
      %v244 = vadd.f32 %v242, %v243
      %v245 = vrot.slane %v244, 4
      %v246 = vadd.f32 %v244, %v245
      %v247 = vrot.slane %v246, 2
      %v248 = vadd.f32 %v246, %v247
      %v249 = vrot.slane %v248, 1
      %v250 = vadd.f32 %v248, %v249
      %v251 = vsel %vm228, %v223, 0.0
      %v252 = vsel %vm229, %v224, 0.0
      %v253 = vsel %vm230, %v225, 0.0
      %v254 = vsel %vm231, %v226, 0.0
      %v255 = vsel %vm237, %v251, 0.0
      %v256 = vsel %vm237, %v252, 0.0
      %v257 = vadd.f32 %v255, %v256
      %v258 = vsel %vm237, %v253, 0.0
      %v259 = vadd.f32 %v257, %v258
      %v260 = vsel %vm237, %v254, 0.0
      %v261 = vadd.f32 %v259, %v260
      %v262 = vrot.slane %v261, 4
      %v263 = vadd.f32 %v261, %v262
      %v264 = vrot.slane %v263, 2
      %v265 = vadd.f32 %v263, %v264
      %v266 = vrot.slane %v265, 1
      %v267 = vadd.f32 %v265, %v266
      %v268 = vsel %vm232, %v250, 0.0
      %v269 = vsel %vm237, %v268, 0.0
      %270 = vadd.xlane.f32.xlu0 %v269
      %v271 = vpop.xlane.xlu0 %270
      %v272 = vrcp.pop %v271
      %v273 = vmul.f32 1.0, %v272
      %v274 = vmul.f32 %v250, %v273
      %v275 = vmul.f32 %v267, %v273
      %v276 = vsel %vm232, %v219, 0.0
      %v277 = vsel %vm232, %v220, 0.0
      %v278 = vsel %vm232, %v221, 0.0
      %v279 = vsel %vm232, %v222, 0.0
      %v280 = vsel %vm237, %v276, 0.0
      %281 = vadd.xlane.f32.xlu0 %v280
      %v282 = vpop.xlane.xlu0 %281
      %v283 = vsel %vm237, %v277, 0.0
      %284 = vadd.xlane.f32.xlu0 %v283
      %v285 = vpop.xlane.xlu0 %284
      %v286 = vsel %vm237, %v278, 0.0
      %287 = vadd.xlane.f32.xlu0 %v286
      %v288 = vpop.xlane.xlu0 %287
      %v289 = vsel %vm237, %v279, 0.0
      %290 = vadd.xlane.f32.xlu0 %v289
      %v291 = vpop.xlane.xlu0 %290
      %v292 = vsel %vm228, 0.0, %v282
      %v293 = vsel %vm229, 0.0, %v285
      %v294 = vsel %vm230, 0.0, %v288
      %v295 = vsel %vm231, 0.0, %v291
      %v296 = vmul.f32 %v292, %v274
      %v297 = vmul.f32 %v293, %v274
      %v298 = vmul.f32 %v294, %v274
      %v299 = vmul.f32 %v295, %v274
      %v300 = vsub.f32 %v219, %v296
      %v301 = vsub.f32 %v220, %v297
      %v302 = vsub.f32 %v221, %v298
      %v303 = vsub.f32 %v222, %v299
      %v304 = vmul.f32 %v292, %v275
      %v305 = vmul.f32 %v293, %v275
      %v306 = vmul.f32 %v294, %v275
      %v307 = vmul.f32 %v295, %v275
      %v308 = vsub.f32 %v223, %v304
      %v309 = vsub.f32 %v224, %v305
      %v310 = vsub.f32 %v225, %v306
      %v311 = vsub.f32 %v226, %v307
      %v312 = vsel %vm228, %v274, %v300
      %v313 = vsel %vm229, %v274, %v301
      %v314 = vsel %vm230, %v274, %v302
      %v315 = vsel %vm231, %v274, %v303
      %v316 = vsel %vm228, %v275, %v308
      %v317 = vsel %vm229, %v275, %v309
      %v318 = vsel %vm230, %v275, %v310
      %v319 = vsel %vm231, %v275, %v311
    $region30: #{tpu_custom_call.1} parent=1 // loop_footer
      %s218 = sadd.s32 1, %s214
    $region31: #{tpu_custom_call.1} parent=1 // loop_footer_branch
      %213 = sbr.rel target = $region27
    $region32: #{tpu_custom_call.1} parent=1 // loop_exit
      _
    %vm320 = vcmask 261120
    %v322 = vsel %vm320, %v190, 0
    %v325 = vsel %vm320, %v191, 0
    %v328 = vsel %vm320, %v192, 0
    %v331 = vsel %vm320, %v193, 0
    %333 = vmatprep.subr.mxu0 0.0
    %334 = vmatpush1.msra.mxu0 %v223
    %335 = vmatprep.subr.mxu0 0.0
    %336 = vmatpush1.msra.mxu0 %v224
    %337 = vmatprep.subr.mxu0 0.0
    %338 = vmatpush1.msra.mxu0 %v225
    %339 = vmatprep.subr.mxu0 0.0
    %340 = vmatpush1.msra.mxu0 %v226
    %341 = vmatprep.subr.mxu0 0.0
    %342 = vmatpush1.msra.mxu0 0.0
    %343 = vmatprep.subr.mxu0 0.0
    %344 = vmatpush1.msra.mxu0 0.0
    %345 = vmatprep.subr.mxu0 0.0
    %346 = vmatpush1.msra.mxu0 0.0
    %347 = vmatprep.subr.mxu0 0.0
    %348 = vmatpush1.msra.mxu0 0.0
    %349 = vmatprep.subr.mxu0 0.0
    %350 = vmatpush1.msra.mxu0 0.0
    %351 = vmatprep.subr.mxu0 0.0
    %352 = vmatpush1.msra.mxu0 0.0
    %353 = vmatprep.subr.mxu0 0.0
    %354 = vmatpush1.msra.mxu0 0.0
    %355 = vmatprep.subr.mxu0 0.0
    %356 = vmatpush1.msra.mxu0 0.0
    %357 = vmatprep.subr.mxu0 0.0
    %358 = vmatpush1.msra.mxu0 0.0
    %359 = vmatprep.subr.mxu0 0.0
    %360 = vmatpush1.msra.mxu0 0.0
    %361 = vmatprep.subr.mxu0 0.0
    %362 = vmatpush1.msra.mxu0 0.0
    %363 = vmatprep.subr.mxu0 0.0
    %364 = vmatpush1.msra.mxu0 0.0
    %365 = vmatprep.subr.mxu0 0.0
    %366 = vmatpush1.msra.mxu0 0.0
    %367 = vmatprep.subr.mxu0 0.0
    %368 = vmatpush1.msra.mxu0 0.0
    %369 = vmatprep.subr.mxu0 0.0
    %370 = vmatpush1.msra.mxu0 0.0
    %371 = vmatprep.subr.mxu0 0.0
    %372 = vmatpush1.msra.mxu0 0.0
    %373 = vmatprep.subr.mxu0 0.0
    %374 = vmatpush1.msra.mxu0 0.0
    %375 = vmatprep.subr.mxu0 0.0
    %376 = vmatpush1.msra.mxu0 0.0
    %377 = vmatprep.subr.mxu0 0.0
    %378 = vmatpush1.msra.mxu0 0.0
    %379 = vmatprep.subr.mxu0 0.0
    %380 = vmatpush1.msra.mxu0 0.0
    %381 = vmatprep.subr.mxu0 0.0
    %382 = vmatpush1.msra.mxu0 0.0
    %383 = vmatprep.subr.mxu0 0.0
    %384 = vmatpush1.msra.mxu0 0.0
    %385 = vmatprep.subr.mxu0 0.0
    %386 = vmatpush1.msra.mxu0 0.0
    %387 = vmatprep.subr.mxu0 0.0
    %388 = vmatpush1.msra.mxu0 0.0
    %389 = vmatprep.subr.mxu0 0.0
    %390 = vmatpush1.msra.mxu0 0.0
    %391 = vmatprep.subr.mxu0 0.0
    %392 = vmatpush1.msra.mxu0 0.0
    %393 = vmatprep.subr.mxu0 0.0
    %394 = vmatpush1.msra.mxu0 0.0
    %395 = vmatprep.subr.mxu0 0.0
    %396 = vmatpush1.msra.mxu0 0.0
    %397 = vmatprep.mubr.f32.mxu0 0.0
    %398 = vmatmul.mubr.f32.gmra.mrb[0].mxu0 %v322
    %v399 = vpop.f32.mrb[0].mxu0
    %v400 = vadd.f32 0.0, %v399
    %v401 = vpop.f32.mrb[0].mxu0
    %402 = vmatprep.mubr.f32.mxu0 0.0
    %403 = vmatmul.mubr.f32.gmra.mrb[0].mxu0 %v325
    %v404 = vpop.f32.mrb[0].mxu0
    %v405 = vadd.f32 0.0, %v404
    %v406 = vpop.f32.mrb[0].mxu0
    %407 = vmatprep.mubr.f32.mxu0 0.0
    %408 = vmatmul.mubr.f32.gmra.mrb[0].mxu0 %v328
    %v409 = vpop.f32.mrb[0].mxu0
    %v410 = vadd.f32 0.0, %v409
    %v411 = vpop.f32.mrb[0].mxu0
    %412 = vmatprep.mubr.f32.mxu0 0.0
    %413 = vmatmul.mubr.f32.gmra.mrb[0].mxu0 %v331
    %v414 = vpop.f32.mrb[0].mxu0
    %v415 = vadd.f32 0.0, %v414
    %v416 = vpop.f32.mrb[0].mxu0
    %417 = vdwg.mxu0
    %v418 = vmul.f32 %v209, 2.0
    %v419 = vmul.f32 %v210, 2.0
    %v420 = vmul.f32 %v211, 2.0
    %v421 = vmul.f32 %v212, 2.0
    %v422 = vsub.f32 %v418, %v400
    %v423 = vsub.f32 %v419, %v405
    %v424 = vsub.f32 %v420, %v410
    %v425 = vsub.f32 %v421, %v415
    %v427 = vsel %vm320, %v223, 0
    %v430 = vsel %vm320, %v224, 0
    %v433 = vsel %vm320, %v225, 0
    %v436 = vsel %vm320, %v226, 0
    %438 = vmatprep.subr.mxu0 0.0
    %439 = vmatpush1.msra.mxu0 %v422
    %440 = vmatprep.subr.mxu0 0.0
    %441 = vmatpush1.msra.mxu0 %v423
    %442 = vmatprep.subr.mxu0 0.0
    %443 = vmatpush1.msra.mxu0 %v424
    %444 = vmatprep.subr.mxu0 0.0
    %445 = vmatpush1.msra.mxu0 %v425
    %446 = vmatprep.subr.mxu0 0.0
    %447 = vmatpush1.msra.mxu0 0.0
    %448 = vmatprep.subr.mxu0 0.0
    %449 = vmatpush1.msra.mxu0 0.0
    %450 = vmatprep.subr.mxu0 0.0
    %451 = vmatpush1.msra.mxu0 0.0
    %452 = vmatprep.subr.mxu0 0.0
    %453 = vmatpush1.msra.mxu0 0.0
    %454 = vmatprep.subr.mxu0 0.0
    %455 = vmatpush1.msra.mxu0 0.0
    %456 = vmatprep.subr.mxu0 0.0
    %457 = vmatpush1.msra.mxu0 0.0
    %458 = vmatprep.subr.mxu0 0.0
    %459 = vmatpush1.msra.mxu0 0.0
    %460 = vmatprep.subr.mxu0 0.0
    %461 = vmatpush1.msra.mxu0 0.0
    %462 = vmatprep.subr.mxu0 0.0
    %463 = vmatpush1.msra.mxu0 0.0
    %464 = vmatprep.subr.mxu0 0.0
    %465 = vmatpush1.msra.mxu0 0.0
    %466 = vmatprep.subr.mxu0 0.0
    %467 = vmatpush1.msra.mxu0 0.0
    %468 = vmatprep.subr.mxu0 0.0
    %469 = vmatpush1.msra.mxu0 0.0
    %470 = vmatprep.subr.mxu0 0.0
    %471 = vmatpush1.msra.mxu0 0.0
    %472 = vmatprep.subr.mxu0 0.0
    %473 = vmatpush1.msra.mxu0 0.0
    %474 = vmatprep.subr.mxu0 0.0
    %475 = vmatpush1.msra.mxu0 0.0
    %476 = vmatprep.subr.mxu0 0.0
    %477 = vmatpush1.msra.mxu0 0.0
    %478 = vmatprep.subr.mxu0 0.0
    %479 = vmatpush1.msra.mxu0 0.0
    %480 = vmatprep.subr.mxu0 0.0
    %481 = vmatpush1.msra.mxu0 0.0
    %482 = vmatprep.subr.mxu0 0.0
    %483 = vmatpush1.msra.mxu0 0.0
    %484 = vmatprep.subr.mxu0 0.0
    %485 = vmatpush1.msra.mxu0 0.0
    %486 = vmatprep.subr.mxu0 0.0
    %487 = vmatpush1.msra.mxu0 0.0
    %488 = vmatprep.subr.mxu0 0.0
    %489 = vmatpush1.msra.mxu0 0.0
    %490 = vmatprep.subr.mxu0 0.0
    %491 = vmatpush1.msra.mxu0 0.0
    %492 = vmatprep.subr.mxu0 0.0
    %493 = vmatpush1.msra.mxu0 0.0
    %494 = vmatprep.subr.mxu0 0.0
    %495 = vmatpush1.msra.mxu0 0.0
    %496 = vmatprep.subr.mxu0 0.0
    %497 = vmatpush1.msra.mxu0 0.0
    %498 = vmatprep.subr.mxu0 0.0
    %499 = vmatpush1.msra.mxu0 0.0
    %500 = vmatprep.subr.mxu0 0.0
    %501 = vmatpush1.msra.mxu0 0.0
    %502 = vmatprep.mubr.f32.mxu0 0.0
    %503 = vmatmul.mubr.f32.gmra.mrb[0].mxu0 %v427
    %v504 = vpop.f32.mrb[0].mxu0
    %v505 = vadd.f32 0.0, %v504
    %v506 = vpop.f32.mrb[0].mxu0
    %507 = vmatprep.mubr.f32.mxu0 0.0
    %508 = vmatmul.mubr.f32.gmra.mrb[0].mxu0 %v430
    %v509 = vpop.f32.mrb[0].mxu0
    %v510 = vadd.f32 0.0, %v509
    %v511 = vpop.f32.mrb[0].mxu0
    %512 = vmatprep.mubr.f32.mxu0 0.0
    %513 = vmatmul.mubr.f32.gmra.mrb[0].mxu0 %v433
    %v514 = vpop.f32.mrb[0].mxu0
    %v515 = vadd.f32 0.0, %v514
    %v516 = vpop.f32.mrb[0].mxu0
    %517 = vmatprep.mubr.f32.mxu0 0.0
    %518 = vmatmul.mubr.f32.gmra.mrb[0].mxu0 %v436
    %v519 = vpop.f32.mrb[0].mxu0
    %v520 = vadd.f32 0.0, %v519
    %v521 = vpop.f32.mrb[0].mxu0
    %522 = vdwg.mxu0
    %523 = vst.msk [vmem:[#allocation7] sm:$0xff] %vm320, %v505
    %524 = vst.msk [vmem:[#allocation7 + $0x8] sm:$0xff] %vm320, %v510
    %525 = vst.msk [vmem:[#allocation7 + $0x10] sm:$0xff] %vm320, %v515
    %526 = vst.msk [vmem:[#allocation7 + $0x18] sm:$0xff] %vm320, %v520
    %v527 = vld [vmem:[%s2] sm:$0x1]
    %v529 = vsel %vm320, %v527, 0
    %v532 = vsel %vm320, %v52, 0
    %v535 = vsel %vm320, %v53, 0
    %v538 = vsel %vm320, %v54, 0
    %v541 = vsel %vm320, %v55, 0
    %543 = vmatprep.subr.mxu0 0.0
    %544 = vmatpush1.xpose.msra.mxu0 %v532
    %545 = vmatprep.subr.mxu0 0.0
    %546 = vmatpush1.xpose.msra.mxu0 %v535
    %547 = vmatprep.subr.mxu0 0.0
    %548 = vmatpush1.xpose.msra.mxu0 %v538
    %549 = vmatprep.subr.mxu0 0.0
    %550 = vmatpush1.xpose.msra.mxu0 %v541
    %551 = vmatprep.subr.mxu0 0.0
    %552 = vmatpush1.xpose.msra.mxu0 0.0
    %553 = vmatprep.subr.mxu0 0.0
    %554 = vmatpush1.xpose.msra.mxu0 0.0
    %555 = vmatprep.subr.mxu0 0.0
    %556 = vmatpush1.xpose.msra.mxu0 0.0
    %557 = vmatprep.subr.mxu0 0.0
    %558 = vmatpush1.xpose.msra.mxu0 0.0
    %559 = vmatprep.subr.mxu0 0.0
    %560 = vmatpush1.xpose.msra.mxu0 0.0
    %561 = vmatprep.subr.mxu0 0.0
    %562 = vmatpush1.xpose.msra.mxu0 0.0
    %563 = vmatprep.subr.mxu0 0.0
    %564 = vmatpush1.xpose.msra.mxu0 0.0
    %565 = vmatprep.subr.mxu0 0.0
    %566 = vmatpush1.xpose.msra.mxu0 0.0
    %567 = vmatprep.subr.mxu0 0.0
    %568 = vmatpush1.xpose.msra.mxu0 0.0
    %569 = vmatprep.subr.mxu0 0.0
    %570 = vmatpush1.xpose.msra.mxu0 0.0
    %571 = vmatprep.subr.mxu0 0.0
    %572 = vmatpush1.xpose.msra.mxu0 0.0
    %573 = vmatprep.subr.mxu0 0.0
    %574 = vmatpush1.xpose.msra.mxu0 0.0
    %575 = vmatprep.subr.mxu0 0.0
    %576 = vmatpush1.xpose.msra.mxu0 0.0
    %577 = vmatprep.subr.mxu0 0.0
    %578 = vmatpush1.xpose.msra.mxu0 0.0
    %579 = vmatprep.subr.mxu0 0.0
    %580 = vmatpush1.xpose.msra.mxu0 0.0
    %581 = vmatprep.subr.mxu0 0.0
    %582 = vmatpush1.xpose.msra.mxu0 0.0
    %583 = vmatprep.subr.mxu0 0.0
    %584 = vmatpush1.xpose.msra.mxu0 0.0
    %585 = vmatprep.subr.mxu0 0.0
    %586 = vmatpush1.xpose.msra.mxu0 0.0
    %587 = vmatprep.subr.mxu0 0.0
    %588 = vmatpush1.xpose.msra.mxu0 0.0
    %589 = vmatprep.subr.mxu0 0.0
    %590 = vmatpush1.xpose.msra.mxu0 0.0
    %591 = vmatprep.subr.mxu0 0.0
    %592 = vmatpush1.xpose.msra.mxu0 0.0
    %593 = vmatprep.subr.mxu0 0.0
    %594 = vmatpush1.xpose.msra.mxu0 0.0
    %595 = vmatprep.subr.mxu0 0.0
    %596 = vmatpush1.xpose.msra.mxu0 0.0
    %597 = vmatprep.subr.mxu0 0.0
    %598 = vmatpush1.xpose.msra.mxu0 0.0
    %599 = vmatprep.subr.mxu0 0.0
    %600 = vmatpush1.xpose.msra.mxu0 0.0
    %601 = vmatprep.subr.mxu0 0.0
    %602 = vmatpush1.xpose.msra.mxu0 0.0
    %603 = vmatprep.subr.mxu0 0.0
    %604 = vmatpush1.xpose.msra.mxu0 0.0
    %605 = vmatprep.subr.mxu0 0.0
    %606 = vmatpush1.xpose.msra.mxu0 0.0
    %607 = vmatprep.mubr.f32.mxu0 0.0
    %608 = vmatmul.mubr.f32.gmra.mrb[0].mxu0 %v529
    %v609 = vpop.f32.mrb[0].mxu0
    %v610 = vadd.f32 0.0, %v609
    %v611 = vpop.f32.mrb[0].mxu0
    %612 = vdwg.mxu0
    %v613 = vld [vmem:[%s3] sm:$0x1]
    %v615 = vsel %vm320, %v50, 0
    %v618 = vsel %vm320, %v51, 0
    %v621 = vsel %vm320, %v505, 0
    %v624 = vsel %vm320, %v510, 0
    %v627 = vsel %vm320, %v515, 0
    %v630 = vsel %vm320, %v520, 0
    %632 = vmatprep.subr.mxu0 0.0
    %633 = vmatpush1.xpose.msra.mxu0 %v621
    %634 = vmatprep.subr.mxu0 0.0
    %635 = vmatpush1.xpose.msra.mxu0 %v624
    %636 = vmatprep.subr.mxu0 0.0
    %637 = vmatpush1.xpose.msra.mxu0 %v627
    %638 = vmatprep.subr.mxu0 0.0
    %639 = vmatpush1.xpose.msra.mxu0 %v630
    %640 = vmatprep.subr.mxu0 0.0
    %641 = vmatpush1.xpose.msra.mxu0 0.0
    %642 = vmatprep.subr.mxu0 0.0
    %643 = vmatpush1.xpose.msra.mxu0 0.0
    %644 = vmatprep.subr.mxu0 0.0
    %645 = vmatpush1.xpose.msra.mxu0 0.0
    %646 = vmatprep.subr.mxu0 0.0
    %647 = vmatpush1.xpose.msra.mxu0 0.0
    %648 = vmatprep.subr.mxu0 0.0
    %649 = vmatpush1.xpose.msra.mxu0 0.0
    %650 = vmatprep.subr.mxu0 0.0
    %651 = vmatpush1.xpose.msra.mxu0 0.0
    %652 = vmatprep.subr.mxu0 0.0
    %653 = vmatpush1.xpose.msra.mxu0 0.0
    %654 = vmatprep.subr.mxu0 0.0
    %655 = vmatpush1.xpose.msra.mxu0 0.0
    %656 = vmatprep.subr.mxu0 0.0
    %657 = vmatpush1.xpose.msra.mxu0 0.0
    %658 = vmatprep.subr.mxu0 0.0
    %659 = vmatpush1.xpose.msra.mxu0 0.0
    %660 = vmatprep.subr.mxu0 0.0
    %661 = vmatpush1.xpose.msra.mxu0 0.0
    %662 = vmatprep.subr.mxu0 0.0
    %663 = vmatpush1.xpose.msra.mxu0 0.0
    %664 = vmatprep.subr.mxu0 0.0
    %665 = vmatpush1.xpose.msra.mxu0 0.0
    %666 = vmatprep.subr.mxu0 0.0
    %667 = vmatpush1.xpose.msra.mxu0 0.0
    %668 = vmatprep.subr.mxu0 0.0
    %669 = vmatpush1.xpose.msra.mxu0 0.0
    %670 = vmatprep.subr.mxu0 0.0
    %671 = vmatpush1.xpose.msra.mxu0 0.0
    %672 = vmatprep.subr.mxu0 0.0
    %673 = vmatpush1.xpose.msra.mxu0 0.0
    %674 = vmatprep.subr.mxu0 0.0
    %675 = vmatpush1.xpose.msra.mxu0 0.0
    %676 = vmatprep.subr.mxu0 0.0
    %677 = vmatpush1.xpose.msra.mxu0 0.0
    %678 = vmatprep.subr.mxu0 0.0
    %679 = vmatpush1.xpose.msra.mxu0 0.0
    %680 = vmatprep.subr.mxu0 0.0
    %681 = vmatpush1.xpose.msra.mxu0 0.0
    %682 = vmatprep.subr.mxu0 0.0
    %683 = vmatpush1.xpose.msra.mxu0 0.0
    %684 = vmatprep.subr.mxu0 0.0
    %685 = vmatpush1.xpose.msra.mxu0 0.0
    %686 = vmatprep.subr.mxu0 0.0
    %687 = vmatpush1.xpose.msra.mxu0 0.0
    %688 = vmatprep.subr.mxu0 0.0
    %689 = vmatpush1.xpose.msra.mxu0 0.0
    %690 = vmatprep.subr.mxu0 0.0
    %691 = vmatpush1.xpose.msra.mxu0 0.0
    %692 = vmatprep.subr.mxu0 0.0
    %693 = vmatpush1.xpose.msra.mxu0 0.0
    %694 = vmatprep.subr.mxu0 0.0
    %695 = vmatpush1.xpose.msra.mxu0 0.0
    %696 = vmatprep.mubr.f32.mxu0 0.0
    %697 = vmatmul.mubr.f32.gmra.mrb[0].mxu0 %v615
    %v698 = vpop.f32.mrb[0].mxu0
    %v699 = vadd.f32 0.0, %v698
    %v700 = vpop.f32.mrb[0].mxu0
    %701 = vmatprep.mubr.f32.mxu0 0.0
    %702 = vmatmul.mubr.f32.gmra.mrb[0].mxu0 %v618
    %v703 = vpop.f32.mrb[0].mxu0
    %v704 = vadd.f32 0.0, %v703
    %v705 = vpop.f32.mrb[0].mxu0
    %706 = vdwg.mxu0
    %v707 = vmul.f32 %v699, 1000000.0
    %v708 = vmul.f32 %v704, 1000000.0
    %v710 = vsel %vm320, %v610, 0
    %712 = vmatprep.subr.mxu0 0.0
    %713 = vmatpush1.xpose.msra.mxu0 %v621
    %714 = vmatprep.subr.mxu0 0.0
    %715 = vmatpush1.xpose.msra.mxu0 %v624
    %716 = vmatprep.subr.mxu0 0.0
    %717 = vmatpush1.xpose.msra.mxu0 %v627
    %718 = vmatprep.subr.mxu0 0.0
    %719 = vmatpush1.xpose.msra.mxu0 %v630
    %720 = vmatprep.subr.mxu0 0.0
    %721 = vmatpush1.xpose.msra.mxu0 0.0
    %722 = vmatprep.subr.mxu0 0.0
    %723 = vmatpush1.xpose.msra.mxu0 0.0
    %724 = vmatprep.subr.mxu0 0.0
    %725 = vmatpush1.xpose.msra.mxu0 0.0
    %726 = vmatprep.subr.mxu0 0.0
    %727 = vmatpush1.xpose.msra.mxu0 0.0
    %728 = vmatprep.subr.mxu0 0.0
    %729 = vmatpush1.xpose.msra.mxu0 0.0
    %730 = vmatprep.subr.mxu0 0.0
    %731 = vmatpush1.xpose.msra.mxu0 0.0
    %732 = vmatprep.subr.mxu0 0.0
    %733 = vmatpush1.xpose.msra.mxu0 0.0
    %734 = vmatprep.subr.mxu0 0.0
    %735 = vmatpush1.xpose.msra.mxu0 0.0
    %736 = vmatprep.subr.mxu0 0.0
    %737 = vmatpush1.xpose.msra.mxu0 0.0
    %738 = vmatprep.subr.mxu0 0.0
    %739 = vmatpush1.xpose.msra.mxu0 0.0
    %740 = vmatprep.subr.mxu0 0.0
    %741 = vmatpush1.xpose.msra.mxu0 0.0
    %742 = vmatprep.subr.mxu0 0.0
    %743 = vmatpush1.xpose.msra.mxu0 0.0
    %744 = vmatprep.subr.mxu0 0.0
    %745 = vmatpush1.xpose.msra.mxu0 0.0
    %746 = vmatprep.subr.mxu0 0.0
    %747 = vmatpush1.xpose.msra.mxu0 0.0
    %748 = vmatprep.subr.mxu0 0.0
    %749 = vmatpush1.xpose.msra.mxu0 0.0
    %750 = vmatprep.subr.mxu0 0.0
    %751 = vmatpush1.xpose.msra.mxu0 0.0
    %752 = vmatprep.subr.mxu0 0.0
    %753 = vmatpush1.xpose.msra.mxu0 0.0
    %754 = vmatprep.subr.mxu0 0.0
    %755 = vmatpush1.xpose.msra.mxu0 0.0
    %756 = vmatprep.subr.mxu0 0.0
    %757 = vmatpush1.xpose.msra.mxu0 0.0
    %758 = vmatprep.subr.mxu0 0.0
    %759 = vmatpush1.xpose.msra.mxu0 0.0
    %760 = vmatprep.subr.mxu0 0.0
    %761 = vmatpush1.xpose.msra.mxu0 0.0
    %762 = vmatprep.subr.mxu0 0.0
    %763 = vmatpush1.xpose.msra.mxu0 0.0
    %764 = vmatprep.subr.mxu0 0.0
    %765 = vmatpush1.xpose.msra.mxu0 0.0
    %766 = vmatprep.subr.mxu0 0.0
    %767 = vmatpush1.xpose.msra.mxu0 0.0
    %768 = vmatprep.subr.mxu0 0.0
    %769 = vmatpush1.xpose.msra.mxu0 0.0
    %770 = vmatprep.subr.mxu0 0.0
    %771 = vmatpush1.xpose.msra.mxu0 0.0
    %772 = vmatprep.subr.mxu0 0.0
    %773 = vmatpush1.xpose.msra.mxu0 0.0
    %774 = vmatprep.subr.mxu0 0.0
    %775 = vmatpush1.xpose.msra.mxu0 0.0
    %776 = vmatprep.mubr.f32.mxu0 0.0
    %777 = vmatmul.mubr.f32.gmra.mrb[0].mxu0 %v710
    %v778 = vpop.f32.mrb[0].mxu0
    %v779 = vadd.f32 0.0, %v778
    %v780 = vpop.f32.mrb[0].mxu0
    %781 = vdwg.mxu0
    %v783 = vsel %vm88, %v613, 0
    %785 = vmatprep.subr.mxu0 0.0
    %786 = vmatpush1.msra.mxu0 %v707
    %787 = vmatprep.subr.mxu0 0.0
    %788 = vmatpush1.msra.mxu0 %v708
    %789 = vmatprep.subr.mxu0 0.0
    %790 = vmatpush1.msra.mxu0 0.0
    %791 = vmatprep.subr.mxu0 0.0
    %792 = vmatpush1.msra.mxu0 0.0
    %793 = vmatprep.subr.mxu0 0.0
    %794 = vmatpush1.msra.mxu0 0.0
    %795 = vmatprep.subr.mxu0 0.0
    %796 = vmatpush1.msra.mxu0 0.0
    %797 = vmatprep.subr.mxu0 0.0
    %798 = vmatpush1.msra.mxu0 0.0
    %799 = vmatprep.subr.mxu0 0.0
    %800 = vmatpush1.msra.mxu0 0.0
    %801 = vmatprep.subr.mxu0 0.0
    %802 = vmatpush1.msra.mxu0 0.0
    %803 = vmatprep.subr.mxu0 0.0
    %804 = vmatpush1.msra.mxu0 0.0
    %805 = vmatprep.subr.mxu0 0.0
    %806 = vmatpush1.msra.mxu0 0.0
    %807 = vmatprep.subr.mxu0 0.0
    %808 = vmatpush1.msra.mxu0 0.0
    %809 = vmatprep.subr.mxu0 0.0
    %810 = vmatpush1.msra.mxu0 0.0
    %811 = vmatprep.subr.mxu0 0.0
    %812 = vmatpush1.msra.mxu0 0.0
    %813 = vmatprep.subr.mxu0 0.0
    %814 = vmatpush1.msra.mxu0 0.0
    %815 = vmatprep.subr.mxu0 0.0
    %816 = vmatpush1.msra.mxu0 0.0
    %817 = vmatprep.subr.mxu0 0.0
    %818 = vmatpush1.msra.mxu0 0.0
    %819 = vmatprep.subr.mxu0 0.0
    %820 = vmatpush1.msra.mxu0 0.0
    %821 = vmatprep.subr.mxu0 0.0
    %822 = vmatpush1.msra.mxu0 0.0
    %823 = vmatprep.subr.mxu0 0.0
    %824 = vmatpush1.msra.mxu0 0.0
    %825 = vmatprep.subr.mxu0 0.0
    %826 = vmatpush1.msra.mxu0 0.0
    %827 = vmatprep.subr.mxu0 0.0
    %828 = vmatpush1.msra.mxu0 0.0
    %829 = vmatprep.subr.mxu0 0.0
    %830 = vmatpush1.msra.mxu0 0.0
    %831 = vmatprep.subr.mxu0 0.0
    %832 = vmatpush1.msra.mxu0 0.0
    %833 = vmatprep.subr.mxu0 0.0
    %834 = vmatpush1.msra.mxu0 0.0
    %835 = vmatprep.subr.mxu0 0.0
    %836 = vmatpush1.msra.mxu0 0.0
    %837 = vmatprep.subr.mxu0 0.0
    %838 = vmatpush1.msra.mxu0 0.0
    %839 = vmatprep.subr.mxu0 0.0
    %840 = vmatpush1.msra.mxu0 0.0
    %841 = vmatprep.subr.mxu0 0.0
    %842 = vmatpush1.msra.mxu0 0.0
    %843 = vmatprep.subr.mxu0 0.0
    %844 = vmatpush1.msra.mxu0 0.0
    %845 = vmatprep.subr.mxu0 0.0
    %846 = vmatpush1.msra.mxu0 0.0
    %847 = vmatprep.subr.mxu0 0.0
    %848 = vmatpush1.msra.mxu0 0.0
    %849 = vmatprep.mubr.f32.mxu0 0.0
    %850 = vmatmul.mubr.f32.gmra.mrb[0].mxu0 %v783
    %v851 = vpop.f32.mrb[0].mxu0
    %v852 = vadd.f32 0.0, %v851
    %v853 = vpop.f32.mrb[0].mxu0
    %854 = vdwg.mxu0
    %v855 = vsub.f32 %v779, %v852
    %856 = vst.msk [vmem:[#allocation8] sm:$0xff] %vm320, %v707
    %857 = vst.msk [vmem:[#allocation8 + $0x8] sm:$0xff] %vm320, %v708
    %vm858 = vcmask 253952
    %859 = vst.msk [vmem:[#allocation10] sm:$0x1] %vm858, %v855
    // Predicated region
    $region33: #{tpu_custom_call.1} parent=1 // pred_check
      _
    $region34: #{tpu_custom_call.1} parent=1 // pred_check_branch
      %861 = sbr.rel (0) target = $region36
    $region35: #{tpu_custom_call.1} parent=1 // pred_region
      %s863 = ssub.s32 512, 512
      %864 = vsyncadd [#allocation4], %s863
      %s865 = sshll.u32 [#allocation7], 4
      %s866 = int_to_ptr.vmem [resolvable:$true] %s865
      %871 = dma.vmem_to_hbm [thread:$0]  %s866, 512, %s4, [#allocation4], 128, 128, 8
    $region36: #{tpu_custom_call.1} parent=1 // pred_fallthru
      _
    // Predicated region
    $region37: #{tpu_custom_call.1} parent=1 // pred_check
      _
    $region38: #{tpu_custom_call.1} parent=1 // pred_check_branch
      %873 = sbr.rel (0) target = $region40
    $region39: #{tpu_custom_call.1} parent=1 // pred_region
      %s875 = ssub.s32 256, 256
      %876 = vsyncadd [#allocation9], %s875
      %s877 = sshll.u32 [#allocation8], 4
      %s878 = int_to_ptr.vmem [resolvable:$true] %s877
      %883 = dma.vmem_to_hbm [thread:$0]  %s878, 256, %s5, [#allocation9], 128, 128, 8
    $region40: #{tpu_custom_call.1} parent=1 // pred_fallthru
      _
    // Predicated region
    $region41: #{tpu_custom_call.1} parent=1 // pred_check
      _
    $region42: #{tpu_custom_call.1} parent=1 // pred_check_branch
      %885 = sbr.rel (0) target = $region44
    $region43: #{tpu_custom_call.1} parent=1 // pred_region
      %s887 = ssub.s32 16, 16
      %888 = vsyncadd [#allocation9], %s887
      %s890 = sshll.u32 [#allocation10], 4
      %s891 = int_to_ptr.vmem [resolvable:$true] %s890
      %893 = dma.vmem_to_hbm [thread:$0]  %s891, 16, %s6, [#allocation9]
    $region44: #{tpu_custom_call.1} parent=1 // pred_fallthru
      _
    // Predicated region
    $region45: #{tpu_custom_call.1} parent=1 // pred_check
      _
    $region46: #{tpu_custom_call.1} parent=1 // pred_check_branch
      %895 = sbr.rel (0) target = $region48
    $region47: #{tpu_custom_call.1} parent=1 // pred_region
      %896 = dma.done [#allocation4], 512
    $region48: #{tpu_custom_call.1} parent=1 // pred_fallthru
      _
    // Predicated region
    $region49: #{tpu_custom_call.1} parent=1 // pred_check
      _
    $region50: #{tpu_custom_call.1} parent=1 // pred_check_branch
      %898 = sbr.rel (0) target = $region52
    $region51: #{tpu_custom_call.1} parent=1 // pred_region
      %899 = dma.done [#allocation9], 256
    $region52: #{tpu_custom_call.1} parent=1 // pred_fallthru
      _
    // Predicated region
    $region53: #{tpu_custom_call.1} parent=1 // pred_check
      _
    $region54: #{tpu_custom_call.1} parent=1 // pred_check_branch
      %901 = sbr.rel (0) target = $region56
    $region55: #{tpu_custom_call.1} parent=1 // pred_region
      %902 = dma.done [#allocation9], 16
    $region56: #{tpu_custom_call.1} parent=1 // pred_fallthru
      _
    %903 = vsyncpa [#allocation3], 1
    %904 = vsyncpa [#allocation6], 1
    %905 = vsyncpa [#allocation4], 1
    %906 = vsyncpa [#allocation9], 1

</llo_original>
